<compile_context>
chip_gen: v6e
topology: v6e:2x2x1
jax: 0.10.0
libtpu: 0.0.40
codegen_flags: <defaults>
</compile_context>

<pallas_src>
import jax
import jax.numpy as jnp
from jax.experimental import pallas as pl
from jax.experimental.pallas import tpu as pltpu

_LANE = 128  # vreg lane width


def _round_up(x, m):
    return ((x + m - 1) // m) * m


def _round_down(x, m):
    return (x // m) * m


def _vmem_budget_bytes():
    """~75% of physical VMEM, capped at 100 MiB.
    v5e/v6e (128 MiB) -> ~96 MiB, v7x (64 MiB) -> 48 MiB."""
    cap = 64 << 20  # conservative (v7x-sized) default if the query fails
    try:
        info = pltpu.get_tpu_info()
        cap = int(getattr(info, "vmem_capacity_bytes", cap))
    except Exception:
        pass
    return int(min((cap * 3) // 4, 100 << 20))


def _resident_kernel(x_ref, t_ref, o_ref):
    """1-D grid over batch tiles; whole transition matrix is VMEM-resident."""
    o_ref[...] = jnp.dot(
        x_ref[...], t_ref[...], preferred_element_type=jnp.float32
    ).astype(o_ref.dtype)


def _tiled_kernel(x_ref, t_ref, o_ref, acc_ref):
    """Fallback for huge num_class: accumulate in an f32 VMEM scratch and
    cast+store into the out-dtype output block on the last k step."""
    @pl.when(pl.program_id(2) == 0)
    def _():
        acc_ref[...] = jnp.zeros_like(acc_ref)

    acc_ref[...] += jnp.dot(
        x_ref[...], t_ref[...], preferred_element_type=jnp.float32
    )

    @pl.when(pl.program_id(2) == pl.num_programs(2) - 1)
    def _():
        o_ref[...] = acc_ref[...].astype(o_ref.dtype)


def noise_model_forward(x, transition_mat, *, tm=None, compute_dtype=None):
    """out = x @ transition_mat via a Pallas TPU kernel.

    x:              (batch, num_class) float
    transition_mat: (num_class, num_class) float
    compute_dtype:  optional MXU operand dtype (e.g. jnp.bfloat16); the
                    accumulation is always f32 and the output keeps x.dtype.
    """
    batch, num_class = x.shape
    assert transition_mat.shape == (num_class, num_class)

    out_dtype = jnp.dtype(x.dtype)
    cdt = jnp.dtype(compute_dtype) if compute_dtype is not None else out_dtype
    sz_c = cdt.itemsize
    sz_o = out_dtype.itemsize
    sublane = max(8, 32 // sz_c)  # f32 -> 8 rows/vreg, bf16 -> 16

    # Lane-dense class dim (also makes the K reduction exact with zero pad).
    kp = _round_up(num_class, _LANE)
    pad_k = kp - num_class
    vmem_budget = _vmem_budget_bytes()

    # Only touch the operands in HBM when we actually must (pad and/or cast).
    # The K tail of x must be ZERO: garbage there (possibly NaN) times the
    # zero rows of t would otherwise poison the accumulation.
    if pad_k or x.dtype != cdt:
        x_in = jnp.pad(x.astype(cdt), ((0, 0), (0, pad_k)))
    else:
        x_in = x
    if pad_k or transition_mat.dtype != cdt:
        t_in = jnp.pad(transition_mat.astype(cdt), ((0, pad_k), (0, pad_k)))
    else:
        t_in = transition_mat

    bp = _round_up(batch, sublane)           # aligned batch (tile sizing only)
    tm_target = tm if tm is not None else 512

    t_resident_bytes = kp * kp * sz_c        # one copy (constant index map)
    resident_threshold = max(vmem_budget // 3, 8 << 20)

    if t_resident_bytes <= resident_threshold:
        # ---- Common case: whole transition matrix stays resident in VMEM ----
        # Budget conservatively for 2x t (in case single-buffering is refused).
        per_row = 2 * kp * sz_c + 2 * kp * sz_o   # dbl-buffered x + out tiles
        tm_by_vmem = max(sublane,
                         (vmem_budget - 2 * t_resident_bytes) // per_row)
        tm_eff = min(tm_target, 1024, tm_by_vmem)
        if bp >= 2 * _LANE:
            # Keep >= 2 grid steps so v7x's two TensorCores both get work.
            tm_eff = min(tm_eff, _round_up((bp + 1) // 2, _LANE))
        if tm_eff >= bp:
            tm_eff = bp                           # one block covers the batch
        else:
            tm_eff = max(_LANE, _round_down(tm_eff, _LANE))

        grid_m = pl.cdiv(batch, tm_eff)           # partial tail block is masked

        def _run_resident(single_buffer_t):
            if single_buffer_t:
                # Constant block index -> fetched once; a second buffer would
                # only waste kp*kp*itemsize of VMEM.
                t_spec = pl.BlockSpec((kp, kp), lambda i: (0, 0),
                                      pipeline_mode=pl.Buffered(1))
            else:
                t_spec = pl.BlockSpec((kp, kp), lambda i: (0, 0))
            return pl.pallas_call(
                _resident_kernel,
                out_shape=jax.ShapeDtypeStruct((batch, kp), out_dtype),
                grid_spec=pltpu.PrefetchScalarGridSpec(
                    num_scalar_prefetch=0,
                    grid=(grid_m,),
                    in_specs=[
                        pl.BlockSpec((tm_eff, kp), lambda i: (i, 0)),
                        t_spec,
                    ],
                    out_specs=pl.BlockSpec((tm_eff, kp), lambda i: (i, 0)),
                ),
                compiler_params=pltpu.CompilerParams(
                    dimension_semantics=("parallel",),
                    vmem_limit_bytes=int(vmem_budget),
                ),
            )(x_in, t_in)

        try:
            out_p = _run_resident(True)
        except Exception:
            # pl.Buffered(1) not accepted on this version -> default buffering.
            out_p = _run_resident(False)
    else:
        # ---- Very large num_class: classic tiled matmul with VMEM scratch ---
        tn = tk = 256 if kp % 256 == 0 else 128   # divide kp; no extra pad
        denom = 2 * tk * sz_c + 2 * tn * sz_o + tn * 4
        tm_by_vmem = max(sublane,
                         (vmem_budget - 2 * tk * tn * sz_c) // denom)
        tm_eff = min(tm_target, 1024, tm_by_vmem)
        if tm_eff >= bp:
            tm_eff = bp
        else:
            tm_eff = max(_LANE, _round_down(tm_eff, _LANE))

        out_p = pl.pallas_call(
            _tiled_kernel,
            out_shape=jax.ShapeDtypeStruct((batch, kp), out_dtype),
            grid_spec=pltpu.PrefetchScalarGridSpec(
                num_scalar_prefetch=0,
                grid=(pl.cdiv(batch, tm_eff), kp // tn, kp // tk),
                in_specs=[
                    pl.BlockSpec((tm_eff, tk), lambda i, j, k: (i, k)),
                    pl.BlockSpec((tk, tn), lambda i, j, k: (k, j)),
                ],
                out_specs=pl.BlockSpec((tm_eff, tn), lambda i, j, k: (i, j)),
                scratch_shapes=[pltpu.VMEM((tm_eff, tn), jnp.float32)],
            ),
            compiler_params=pltpu.CompilerParams(
                dimension_semantics=("parallel", "parallel", "arbitrary"),
                vmem_limit_bytes=int(vmem_budget),
            ),
        )(x_in, t_in)

    return out_p[:, :num_class] if pad_k else out_p


class NoiseModel:
    """JAX/Pallas counterpart of the PyTorch module (transition_mat = eye)."""

    def __init__(self, num_class: int, dtype=jnp.float32):
        self.num_class = num_class
        self.transition_mat = jnp.eye(num_class, dtype=dtype)

    def __call__(self, x, **kwargs):
        return noise_model_forward(x, self.transition_mat, **kwargs)


if __name__ == "__main__":
    key = jax.random.PRNGKey(0)
    k1, k2 = jax.random.split(key)

    # Shapes implied by the module: x is (batch, num_class), row-stochastic.
    batch, num_class = 8, 32
    logits = jax.random.normal(k1, (batch, num_class), dtype=jnp.float32)
    x = jax.nn.softmax(logits, axis=-1)

    model = NoiseModel(num_class)                       # transition = identity
    t_eye = model.transition_mat
    t_noisy = 0.9 * t_eye + 0.1 / num_class             # non-trivial transition

    # f32 path (default): tight tolerance vs. pure-JAX reference.
    for t in (t_eye, t_noisy):
        out = jax.block_until_ready(noise_model_forward(x, t))
        ref = x @ t
        assert out.shape == (batch, num_class)
        assert jnp.allclose(out, ref, atol=1e-5, rtol=1e-5)

    # bf16-operand path (f32 accumulation): looser tolerance.
    out_bf16 = jax.block_until_ready(
        noise_model_forward(x, t_noisy, compute_dtype=jnp.bfloat16)
    )
    assert jnp.allclose(out_bf16, x @ t_noisy, atol=5e-3, rtol=5e-3)

    # Lane-dense num_class (no pad/cast HBM pass) with a multi-step batch grid
    # and a partial tail block, exercising the pl.cdiv boundary handling.
    b2, c2 = 300, 128
    x2 = jax.nn.softmax(jax.random.normal(k2, (b2, c2), jnp.float32), axis=-1)
    t2 = 0.95 * jnp.eye(c2, dtype=jnp.float32) + 0.05 / c2
    out2 = jax.block_until_ready(noise_model_forward(x2, t2))
    assert out2.shape == (b2, c2)
    assert jnp.allclose(out2, x2 @ t2, atol=5e-5, rtol=5e-3)

    print("KERNEL_OK")
</pallas_src>

<mosaic_0001>
module attributes {stable_mosaic.version = 11 : i64} {
  func.func @_resident_kernel(%arg0: i32, %arg1: memref<8x128xf32, #tpu.memory_space<vmem>>, %arg2: memref<128x128xf32, #tpu.memory_space<vmem>>, %arg3: memref<8x128xf32, #tpu.memory_space<vmem>>) attributes {dimension_semantics = [#tpu.dimension_semantics<parallel>], iteration_bounds = array<i64: 1>, scalar_prefetch = 0 : i64, scratch_operands = 0 : i64, tpu.core_type = #tpu.core_type<tc>, window_params = [{transform_indices = @transform_0, window_bounds = array<i64: 8, 128>}, {pipeline_mode = #tpu.pipeline_mode<synchronous>, transform_indices = @transform_1, window_bounds = array<i64: 128, 128>}, {transform_indices = @transform_2, window_bounds = array<i64: 8, 128>}]} {
    %c0 = arith.constant 0 : index
    %c0_0 = arith.constant 0 : index
    %0 = vector.load %arg1[%c0, %c0_0] : memref<8x128xf32, #tpu.memory_space<vmem>>, vector<8x128xf32>
    %c0_1 = arith.constant 0 : index
    %c0_2 = arith.constant 0 : index
    %1 = vector.load %arg2[%c0_1, %c0_2] : memref<128x128xf32, #tpu.memory_space<vmem>>, vector<128x128xf32>
    %cst = arith.constant dense<0.000000e+00> : vector<8x128xf32>
    %2 = tpu.matmul %0, %1, %cst {dimension_numbers = #tpu.dot_dimension_numbers<[1], [0], [0], [1], [0, 0, 1, 1], [], []>} : vector<8x128xf32>, vector<128x128xf32>, vector<8x128xf32> -> vector<8x128xf32>
    %c0_3 = arith.constant 0 : index
    %c0_4 = arith.constant 0 : index
    %3 = vector.load %arg3[%c0_3, %c0_4] : memref<8x128xf32, #tpu.memory_space<vmem>>, vector<8x128xf32>
    tpu.vector_store %arg3[%c0_3, %c0_4], %2 {strides = array<i32>} : memref<8x128xf32, #tpu.memory_space<vmem>>, vector<8x128xf32>,
    return
  }
  func.func @transform_0(%arg0: i32) -> (i32, i32) {
    %c0_i32 = arith.constant 0 : i32
    %c0_i32_0 = arith.constant 0 : i32
    return %arg0, %c0_i32 : i32, i32
  }
  func.func @transform_1(%arg0: i32) -> (i32, i32) {
    %c0_i32 = arith.constant 0 : i32
    %c0_i32_0 = arith.constant 0 : i32
    %c0_i32_1 = arith.constant 0 : i32
    return %c0_i32, %c0_i32_0 : i32, i32
  }
  func.func @transform_2(%arg0: i32) -> (i32, i32) {
    %c0_i32 = arith.constant 0 : i32
    %c0_i32_0 = arith.constant 0 : i32
    return %arg0, %c0_i32 : i32, i32
  }
}

module attributes {stable_mosaic.version = 11 : i64} {
  func.func @_resident_kernel(%arg0: i32, %arg1: memref<8x128xf32, #tpu.memory_space<vmem>>, %arg2: memref<128x128xf32, #tpu.memory_space<vmem>>, %arg3: memref<8x128xf32, #tpu.memory_space<vmem>>) attributes {dimension_semantics = [#tpu.dimension_semantics<parallel>], iteration_bounds = array<i64: 1>, scalar_prefetch = 0 : i64, scratch_operands = 0 : i64, tpu.core_type = #tpu.core_type<tc>, window_params = [{transform_indices = @transform_0, window_bounds = array<i64: 8, 128>}, {pipeline_mode = #tpu.pipeline_mode<synchronous>, transform_indices = @transform_1, window_bounds = array<i64: 128, 128>}, {transform_indices = @transform_2, window_bounds = array<i64: 8, 128>}]} {
    %c0 = arith.constant 0 : index
    %c0_0 = arith.constant 0 : index
    %0 = vector.load %arg1[%c0, %c0_0] : memref<8x128xf32, #tpu.memory_space<vmem>>, vector<8x128xf32>
    %c0_1 = arith.constant 0 : index
    %c0_2 = arith.constant 0 : index
    %1 = vector.load %arg2[%c0_1, %c0_2] : memref<128x128xf32, #tpu.memory_space<vmem>>, vector<128x128xf32>
    %cst = arith.constant dense<0.000000e+00> : vector<8x128xf32>
    %2 = tpu.matmul %0, %1, %cst {dimension_numbers = #tpu.dot_dimension_numbers<[1], [0], [0], [1], [0, 0, 1, 1], [], []>} : vector<8x128xf32>, vector<128x128xf32>, vector<8x128xf32> -> vector<8x128xf32>
    %c0_3 = arith.constant 0 : index
    %c0_4 = arith.constant 0 : index
    %3 = vector.load %arg3[%c0_3, %c0_4] : memref<8x128xf32, #tpu.memory_space<vmem>>, vector<8x128xf32>
    tpu.vector_store %arg3[%c0_3, %c0_4], %2 {strides = array<i32>} : memref<8x128xf32, #tpu.memory_space<vmem>>, vector<8x128xf32>,
    return
  }
  func.func @transform_0(%arg0: i32) -> (i32, i32) {
    %c0_i32 = arith.constant 0 : i32
    %c0_i32_0 = arith.constant 0 : i32
    return %arg0, %c0_i32 : i32, i32
  }
  func.func @transform_1(%arg0: i32) -> (i32, i32) {
    %c0_i32 = arith.constant 0 : i32
    %c0_i32_0 = arith.constant 0 : i32
    %c0_i32_1 = arith.constant 0 : i32
    return %c0_i32, %c0_i32_0 : i32, i32
  }
  func.func @transform_2(%arg0: i32) -> (i32, i32) {
    %c0_i32 = arith.constant 0 : i32
    %c0_i32_0 = arith.constant 0 : i32
    return %arg0, %c0_i32 : i32, i32
  }
}

</mosaic_0001>

<llo_original>
// kernel: tpu_custom_call.1
$region0: #{tpu_custom_call.1}
  #allocation0 [shape = 'u32[]', space=smem, size = 0x4, offset = 0x4, fixed_abs, tag = 'smem constant byte address 0x4 - core index']
  #allocation1 [shape = 'u32[144,128]{1,0:T(1,128)}', space=vmem, size = 0x12000, scoped, tag = 'internal scratch']
  %s0 = inlined_call_operand.hbm [shape: f32[8,128], index: 0, kind: input, shape index: {}]
  %s1 = inlined_call_operand.hbm [shape: f32[128,128], index: 1, kind: input, shape index: {}]
  %s2 = inlined_call_operand.hbm [shape: f32[8,128], index: 2, kind: output, shape index: {}]
  %s3 = sld [smem:[#allocation0]]
  $region26: #{tpu_custom_call.1} parent=0
    _
  %s5 = ssub.s32 1, %s3
  %s6 = scalar_select 0, %s5, %s3
  $region1: #{tpu_custom_call.1} parent=0
    #allocation2 [shape = 'u8[4096]{0}', space=vmem, size = 0x1000, scoped, tag = 'input window, operand 0, single buffered']
    #allocation3 [shape = 's32[1]{0}', space=sflag, size = 0x4, scoped, tag = 'scoped memory for tpu_custom_call.1']
    #allocation4 [shape = 's32[1]{0}', space=sflag, size = 0x4, scoped, tag = 'scoped memory for tpu_custom_call.1']
    #allocation5 [shape = 'u8[65536]{0}', space=vmem, size = 0x10000, scoped, tag = 'input window, operand 1, single buffered']
    #allocation6 [shape = 's32[1]{0}', space=sflag, size = 0x4, scoped, tag = 'scoped memory for tpu_custom_call.1']
    #allocation7 [shape = 'u8[4096]{0}', space=vmem, size = 0x1000, scoped, tag = 'output window, operand 0, single buffered']
    %7 = vsyncpa [#allocation3], 0
    %8 = vsyncpa [#allocation6], 0
    %9 = vsyncpa [#allocation4], 0
    // Predicated region
    $region2: #{tpu_custom_call.1} parent=1 // pred_check
      _
    $region3: #{tpu_custom_call.1} parent=1 // pred_check_branch
      %11 = sbr.rel (0) target = $region5
    $region4: #{tpu_custom_call.1} parent=1 // pred_region
      %s13 = ssub.s32 128, 128
      %14 = vsyncadd [#allocation3], %s13
      %s16 = sshll.u32 [#allocation2], 4
      %s17 = int_to_ptr.vmem [resolvable:$true] %s16
      %19 = dma.hbm_to_vmem [thread:$0]  %s0, 128, %s17, [#allocation3]
    $region5: #{tpu_custom_call.1} parent=1 // pred_fallthru
      _
    // Predicated region
    $region6: #{tpu_custom_call.1} parent=1 // pred_check
      _
    $region7: #{tpu_custom_call.1} parent=1 // pred_check_branch
      %21 = sbr.rel (0) target = $region9
    $region8: #{tpu_custom_call.1} parent=1 // pred_region
      %s23 = ssub.s32 2048, 2048
      %24 = vsyncadd [#allocation6], %s23
      %s25 = sshll.u32 [#allocation5], 4
      %s26 = int_to_ptr.vmem [resolvable:$true] %s25
      %31 = dma.hbm_to_vmem [thread:$0]  %s1, 2048, %s26, [#allocation6], 128, 128, 8
    $region9: #{tpu_custom_call.1} parent=1 // pred_fallthru
      _
    // Predicated region
    $region10: #{tpu_custom_call.1} parent=1 // pred_check
      _
    $region11: #{tpu_custom_call.1} parent=1 // pred_check_branch
      %33 = sbr.rel (0) target = $region13
    $region12: #{tpu_custom_call.1} parent=1 // pred_region
      %34 = dma.done [#allocation3], 128
    $region13: #{tpu_custom_call.1} parent=1 // pred_fallthru
      _
    // Predicated region
    $region14: #{tpu_custom_call.1} parent=1 // pred_check
      _
    $region15: #{tpu_custom_call.1} parent=1 // pred_check_branch
      %36 = sbr.rel (0) target = $region17
    $region16: #{tpu_custom_call.1} parent=1 // pred_region
      %37 = dma.done [#allocation6], 2048
    $region17: #{tpu_custom_call.1} parent=1 // pred_fallthru
      _
    %v38 = vld [vmem:[#allocation2] sm:$0xff]
    %v39 = vld [vmem:[#allocation5] sm:$0xff]
    %v40 = vld [vmem:[#allocation5 + $0x8] sm:$0xff]
    %v41 = vld [vmem:[#allocation5 + $0x10] sm:$0xff]
    %v42 = vld [vmem:[#allocation5 + $0x18] sm:$0xff]
    %v43 = vld [vmem:[#allocation5 + $0x20] sm:$0xff]
    %v44 = vld [vmem:[#allocation5 + $0x28] sm:$0xff]
    %v45 = vld [vmem:[#allocation5 + $0x30] sm:$0xff]
    %v46 = vld [vmem:[#allocation5 + $0x38] sm:$0xff]
    %v47 = vld [vmem:[#allocation5 + $0x40] sm:$0xff]
    %v48 = vld [vmem:[#allocation5 + $0x48] sm:$0xff]
    %v49 = vld [vmem:[#allocation5 + $0x50] sm:$0xff]
    %v50 = vld [vmem:[#allocation5 + $0x58] sm:$0xff]
    %v51 = vld [vmem:[#allocation5 + $0x60] sm:$0xff]
    %v52 = vld [vmem:[#allocation5 + $0x68] sm:$0xff]
    %v53 = vld [vmem:[#allocation5 + $0x70] sm:$0xff]
    %v54 = vld [vmem:[#allocation5 + $0x78] sm:$0xff]
    %55 = vmatprep.subr.mxu0 0.0
    %56 = vmatpush1.msra.mxu0 %v54
    %57 = vmatprep.subr.mxu0 0.0
    %58 = vmatpush1.msra.mxu0 %v53
    %59 = vmatprep.subr.mxu0 0.0
    %60 = vmatpush1.msra.mxu0 %v52
    %61 = vmatprep.subr.mxu0 0.0
    %62 = vmatpush1.msra.mxu0 %v51
    %63 = vmatprep.subr.mxu0 0.0
    %64 = vmatpush1.msra.mxu0 %v50
    %65 = vmatprep.subr.mxu0 0.0
    %66 = vmatpush1.msra.mxu0 %v49
    %67 = vmatprep.subr.mxu0 0.0
    %68 = vmatpush1.msra.mxu0 %v48
    %69 = vmatprep.subr.mxu0 0.0
    %70 = vmatpush1.msra.mxu0 %v47
    %71 = vmatprep.subr.mxu0 0.0
    %72 = vmatpush1.msra.mxu0 %v46
    %73 = vmatprep.subr.mxu0 0.0
    %74 = vmatpush1.msra.mxu0 %v45
    %75 = vmatprep.subr.mxu0 0.0
    %76 = vmatpush1.msra.mxu0 %v44
    %77 = vmatprep.subr.mxu0 0.0
    %78 = vmatpush1.msra.mxu0 %v43
    %79 = vmatprep.subr.mxu0 0.0
    %80 = vmatpush1.msra.mxu0 %v42
    %81 = vmatprep.subr.mxu0 0.0
    %82 = vmatpush1.msra.mxu0 %v41
    %83 = vmatprep.subr.mxu0 0.0
    %84 = vmatpush1.msra.mxu0 %v40
    %85 = vmatprep.subr.mxu0 0.0
    %86 = vmatpush1.msra.mxu0 %v39
    %87 = vmatprep.subr.mxu0 0.0
    %88 = vmatpush2.msra.mxu0 0.0
    %89 = vmatprep.subr.mxu0 0.0
    %90 = vmatpush2.msra.mxu0 0.0
    %91 = vmatprep.subr.mxu0 0.0
    %92 = vmatpush2.msra.mxu0 0.0
    %93 = vmatprep.subr.mxu0 0.0
    %94 = vmatpush2.msra.mxu0 0.0
    %95 = vmatprep.subr.mxu0 0.0
    %96 = vmatpush2.msra.mxu0 0.0
    %97 = vmatprep.subr.mxu0 0.0
    %98 = vmatpush2.msra.mxu0 0.0
    %99 = vmatprep.subr.mxu0 0.0
    %100 = vmatpush2.msra.mxu0 0.0
    %101 = vmatprep.subr.mxu0 0.0
    %102 = vmatpush2.msra.mxu0 0.0
    %103 = vmatprep.subr.mxu0 0.0
    %104 = vmatpush2.msra.mxu0 0.0
    %105 = vmatprep.subr.mxu0 0.0
    %106 = vmatpush2.msra.mxu0 0.0
    %107 = vmatprep.subr.mxu0 0.0
    %108 = vmatpush2.msra.mxu0 0.0
    %109 = vmatprep.subr.mxu0 0.0
    %110 = vmatpush2.msra.mxu0 0.0
    %111 = vmatprep.subr.mxu0 0.0
    %112 = vmatpush2.msra.mxu0 0.0
    %113 = vmatprep.subr.mxu0 0.0
    %114 = vmatpush2.msra.mxu0 0.0
    %115 = vmatprep.subr.mxu0 0.0
    %116 = vmatpush2.msra.mxu0 0.0
    %117 = vmatprep.subr.mxu0 0.0
    %118 = vmatpush2.msra.mxu0 0.0
    %119 = vmatprep.mubr.f32.mxu0 0.0
    %120 = vmatmul.mubr.f32.gmra.mxu0 %v38
    %v121 = vpop.f32.mrf.mxu0
    %v122 = vadd.f32 0.0, %v121
    %v123 = vpop.f32.mrf.mxu0
    %124 = vdwg.mxu0
    %125 = vst [vmem:[#allocation7] sm:$0xff] %v122
    // Predicated region
    $region18: #{tpu_custom_call.1} parent=1 // pred_check
      _
    $region19: #{tpu_custom_call.1} parent=1 // pred_check_branch
      %127 = sbr.rel (0) target = $region21
    $region20: #{tpu_custom_call.1} parent=1 // pred_region
      %s129 = ssub.s32 128, 128
      %130 = vsyncadd [#allocation4], %s129
      %s132 = sshll.u32 [#allocation7], 4
      %s133 = int_to_ptr.vmem [resolvable:$true] %s132
      %135 = dma.vmem_to_hbm [thread:$0]  %s133, 128, %s2, [#allocation4]
    $region21: #{tpu_custom_call.1} parent=1 // pred_fallthru
      _
    // Predicated region
    $region22: #{tpu_custom_call.1} parent=1 // pred_check
      _
    $region23: #{tpu_custom_call.1} parent=1 // pred_check_branch
      %137 = sbr.rel (0) target = $region25
    $region24: #{tpu_custom_call.1} parent=1 // pred_region
      %138 = dma.done [#allocation4], 128
    $region25: #{tpu_custom_call.1} parent=1 // pred_fallthru
      _
    %139 = vsyncpa [#allocation3], 1
    %140 = vsyncpa [#allocation6], 1
    %141 = vsyncpa [#allocation4], 1

// kernel: tpu_custom_call.1
$region0: #{tpu_custom_call.1}
  #allocation0 [shape = 'u32[]', space=smem, size = 0x4, offset = 0x4, fixed_abs, tag = 'smem constant byte address 0x4 - core index']
  #allocation1 [shape = 'u32[144,128]{1,0:T(1,128)}', space=vmem, size = 0x12000, scoped, tag = 'internal scratch']
  %s0 = inlined_call_operand.hbm [shape: f32[8,128], index: 0, kind: input, shape index: {}]
  %s1 = inlined_call_operand.hbm [shape: f32[128,128], index: 1, kind: input, shape index: {}]
  %s2 = inlined_call_operand.hbm [shape: f32[8,128], index: 2, kind: output, shape index: {}]
  %s3 = sld [smem:[#allocation0]]
  $region26: #{tpu_custom_call.1} parent=0
    _
  %s5 = ssub.s32 1, %s3
  %s6 = scalar_select 0, %s5, %s3
  $region1: #{tpu_custom_call.1} parent=0
    #allocation2 [shape = 'u8[4096]{0}', space=vmem, size = 0x1000, scoped, tag = 'input window, operand 0, single buffered']
    #allocation3 [shape = 's32[1]{0}', space=sflag, size = 0x4, scoped, tag = 'scoped memory for tpu_custom_call.1']
    #allocation4 [shape = 's32[1]{0}', space=sflag, size = 0x4, scoped, tag = 'scoped memory for tpu_custom_call.1']
    #allocation5 [shape = 'u8[65536]{0}', space=vmem, size = 0x10000, scoped, tag = 'input window, operand 1, single buffered']
    #allocation6 [shape = 's32[1]{0}', space=sflag, size = 0x4, scoped, tag = 'scoped memory for tpu_custom_call.1']
    #allocation7 [shape = 'u8[4096]{0}', space=vmem, size = 0x1000, scoped, tag = 'output window, operand 0, single buffered']
    %7 = vsyncpa [#allocation3], 0
    %8 = vsyncpa [#allocation6], 0
    %9 = vsyncpa [#allocation4], 0
    // Predicated region
    $region2: #{tpu_custom_call.1} parent=1 // pred_check
      _
    $region3: #{tpu_custom_call.1} parent=1 // pred_check_branch
      %11 = sbr.rel (0) target = $region5
    $region4: #{tpu_custom_call.1} parent=1 // pred_region
      %s13 = ssub.s32 128, 128
      %14 = vsyncadd [#allocation3], %s13
      %s16 = sshll.u32 [#allocation2], 4
      %s17 = int_to_ptr.vmem [resolvable:$true] %s16
      %19 = dma.hbm_to_vmem [thread:$0]  %s0, 128, %s17, [#allocation3]
    $region5: #{tpu_custom_call.1} parent=1 // pred_fallthru
      _
    // Predicated region
    $region6: #{tpu_custom_call.1} parent=1 // pred_check
      _
    $region7: #{tpu_custom_call.1} parent=1 // pred_check_branch
      %21 = sbr.rel (0) target = $region9
    $region8: #{tpu_custom_call.1} parent=1 // pred_region
      %s23 = ssub.s32 2048, 2048
      %24 = vsyncadd [#allocation6], %s23
      %s25 = sshll.u32 [#allocation5], 4
      %s26 = int_to_ptr.vmem [resolvable:$true] %s25
      %31 = dma.hbm_to_vmem [thread:$0]  %s1, 2048, %s26, [#allocation6], 128, 128, 8
    $region9: #{tpu_custom_call.1} parent=1 // pred_fallthru
      _
    // Predicated region
    $region10: #{tpu_custom_call.1} parent=1 // pred_check
      _
    $region11: #{tpu_custom_call.1} parent=1 // pred_check_branch
      %33 = sbr.rel (0) target = $region13
    $region12: #{tpu_custom_call.1} parent=1 // pred_region
      %34 = dma.done [#allocation3], 128
    $region13: #{tpu_custom_call.1} parent=1 // pred_fallthru
      _
    // Predicated region
    $region14: #{tpu_custom_call.1} parent=1 // pred_check
      _
    $region15: #{tpu_custom_call.1} parent=1 // pred_check_branch
      %36 = sbr.rel (0) target = $region17
    $region16: #{tpu_custom_call.1} parent=1 // pred_region
      %37 = dma.done [#allocation6], 2048
    $region17: #{tpu_custom_call.1} parent=1 // pred_fallthru
      _
    %v38 = vld [vmem:[#allocation2] sm:$0xff]
    %v39 = vld [vmem:[#allocation5] sm:$0xff]
    %v40 = vld [vmem:[#allocation5 + $0x8] sm:$0xff]
    %v41 = vld [vmem:[#allocation5 + $0x10] sm:$0xff]
    %v42 = vld [vmem:[#allocation5 + $0x18] sm:$0xff]
    %v43 = vld [vmem:[#allocation5 + $0x20] sm:$0xff]
    %v44 = vld [vmem:[#allocation5 + $0x28] sm:$0xff]
    %v45 = vld [vmem:[#allocation5 + $0x30] sm:$0xff]
    %v46 = vld [vmem:[#allocation5 + $0x38] sm:$0xff]
    %v47 = vld [vmem:[#allocation5 + $0x40] sm:$0xff]
    %v48 = vld [vmem:[#allocation5 + $0x48] sm:$0xff]
    %v49 = vld [vmem:[#allocation5 + $0x50] sm:$0xff]
    %v50 = vld [vmem:[#allocation5 + $0x58] sm:$0xff]
    %v51 = vld [vmem:[#allocation5 + $0x60] sm:$0xff]
    %v52 = vld [vmem:[#allocation5 + $0x68] sm:$0xff]
    %v53 = vld [vmem:[#allocation5 + $0x70] sm:$0xff]
    %v54 = vld [vmem:[#allocation5 + $0x78] sm:$0xff]
    %55 = vmatprep.subr.mxu0 0.0
    %56 = vmatpush1.msra.mxu0 %v54
    %57 = vmatprep.subr.mxu0 0.0
    %58 = vmatpush1.msra.mxu0 %v53
    %59 = vmatprep.subr.mxu0 0.0
    %60 = vmatpush1.msra.mxu0 %v52
    %61 = vmatprep.subr.mxu0 0.0
    %62 = vmatpush1.msra.mxu0 %v51
    %63 = vmatprep.subr.mxu0 0.0
    %64 = vmatpush1.msra.mxu0 %v50
    %65 = vmatprep.subr.mxu0 0.0
    %66 = vmatpush1.msra.mxu0 %v49
    %67 = vmatprep.subr.mxu0 0.0
    %68 = vmatpush1.msra.mxu0 %v48
    %69 = vmatprep.subr.mxu0 0.0
    %70 = vmatpush1.msra.mxu0 %v47
    %71 = vmatprep.subr.mxu0 0.0
    %72 = vmatpush1.msra.mxu0 %v46
    %73 = vmatprep.subr.mxu0 0.0
    %74 = vmatpush1.msra.mxu0 %v45
    %75 = vmatprep.subr.mxu0 0.0
    %76 = vmatpush1.msra.mxu0 %v44
    %77 = vmatprep.subr.mxu0 0.0
    %78 = vmatpush1.msra.mxu0 %v43
    %79 = vmatprep.subr.mxu0 0.0
    %80 = vmatpush1.msra.mxu0 %v42
    %81 = vmatprep.subr.mxu0 0.0
    %82 = vmatpush1.msra.mxu0 %v41
    %83 = vmatprep.subr.mxu0 0.0
    %84 = vmatpush1.msra.mxu0 %v40
    %85 = vmatprep.subr.mxu0 0.0
    %86 = vmatpush1.msra.mxu0 %v39
    %87 = vmatprep.subr.mxu0 0.0
    %88 = vmatpush2.msra.mxu0 0.0
    %89 = vmatprep.subr.mxu0 0.0
    %90 = vmatpush2.msra.mxu0 0.0
    %91 = vmatprep.subr.mxu0 0.0
    %92 = vmatpush2.msra.mxu0 0.0
    %93 = vmatprep.subr.mxu0 0.0
    %94 = vmatpush2.msra.mxu0 0.0
    %95 = vmatprep.subr.mxu0 0.0
    %96 = vmatpush2.msra.mxu0 0.0
    %97 = vmatprep.subr.mxu0 0.0
    %98 = vmatpush2.msra.mxu0 0.0
    %99 = vmatprep.subr.mxu0 0.0
    %100 = vmatpush2.msra.mxu0 0.0
    %101 = vmatprep.subr.mxu0 0.0
    %102 = vmatpush2.msra.mxu0 0.0
    %103 = vmatprep.subr.mxu0 0.0
    %104 = vmatpush2.msra.mxu0 0.0
    %105 = vmatprep.subr.mxu0 0.0
    %106 = vmatpush2.msra.mxu0 0.0
    %107 = vmatprep.subr.mxu0 0.0
    %108 = vmatpush2.msra.mxu0 0.0
    %109 = vmatprep.subr.mxu0 0.0
    %110 = vmatpush2.msra.mxu0 0.0
    %111 = vmatprep.subr.mxu0 0.0
    %112 = vmatpush2.msra.mxu0 0.0
    %113 = vmatprep.subr.mxu0 0.0
    %114 = vmatpush2.msra.mxu0 0.0
    %115 = vmatprep.subr.mxu0 0.0
    %116 = vmatpush2.msra.mxu0 0.0
    %117 = vmatprep.subr.mxu0 0.0
    %118 = vmatpush2.msra.mxu0 0.0
    %119 = vmatprep.mubr.f32.mxu0 0.0
    %120 = vmatmul.mubr.f32.gmra.mxu0 %v38
    %v121 = vpop.f32.mrf.mxu0
    %v122 = vadd.f32 0.0, %v121
    %v123 = vpop.f32.mrf.mxu0
    %124 = vdwg.mxu0
    %125 = vst [vmem:[#allocation7] sm:$0xff] %v122
    // Predicated region
    $region18: #{tpu_custom_call.1} parent=1 // pred_check
      _
    $region19: #{tpu_custom_call.1} parent=1 // pred_check_branch
      %127 = sbr.rel (0) target = $region21
    $region20: #{tpu_custom_call.1} parent=1 // pred_region
      %s129 = ssub.s32 128, 128
      %130 = vsyncadd [#allocation4], %s129
      %s132 = sshll.u32 [#allocation7], 4
      %s133 = int_to_ptr.vmem [resolvable:$true] %s132
      %135 = dma.vmem_to_hbm [thread:$0]  %s133, 128, %s2, [#allocation4]
    $region21: #{tpu_custom_call.1} parent=1 // pred_fallthru
      _
    // Predicated region
    $region22: #{tpu_custom_call.1} parent=1 // pred_check
      _
    $region23: #{tpu_custom_call.1} parent=1 // pred_check_branch
      %137 = sbr.rel (0) target = $region25
    $region24: #{tpu_custom_call.1} parent=1 // pred_region
      %138 = dma.done [#allocation4], 128
    $region25: #{tpu_custom_call.1} parent=1 // pred_fallthru
      _
    %139 = vsyncpa [#allocation3], 1
    %140 = vsyncpa [#allocation6], 1
    %141 = vsyncpa [#allocation4], 1

</llo_original>
